<compile_context>
chip_gen: v6e
topology: v6e:2x2x1
jax: 0.10.0
libtpu: 0.0.40
codegen_flags: <defaults>
</compile_context>

<pallas_src>
import functools
import math

import jax
import jax.numpy as jnp
from jax import lax
from jax.experimental import pallas as pl
from jax.experimental.pallas import tpu as pltpu


def _qkv_proj_kernel(x_ref, w_ref, b_ref, q_ref, k_ref, v_ref, *, scale):
    """[tm, D] @ [D, 3D] + b, split into lane-dense q / k / v output slabs."""
    x = x_ref[...].astype(jnp.bfloat16)                       # cast for MXU
    qkv = jnp.dot(x, w_ref[...],
                  preferred_element_type=jnp.float32) + b_ref[...]
    D = q_ref.shape[-1]
    # Layout matches torch reshape(..., 3, H, hd): head h lives at columns
    # [h*hd, (h+1)*hd) of each D-wide slab. Softmax scale folded into q here.
    q_ref[...] = (qkv[:, 0 * D:1 * D] * scale).astype(q_ref.dtype)
    k_ref[...] = qkv[:, 1 * D:2 * D].astype(k_ref.dtype)
    v_ref[...] = qkv[:, 2 * D:3 * D].astype(v_ref.dtype)


def _flash_attn_proj_kernel(q_ref, k_ref, v_ref, wproj_ref, bproj_ref, o_ref,
                            m_sc, l_sc, acc_sc, *, n_heads):
    """Online-softmax attention over key tiles + fused output projection."""
    ki = pl.program_id(2)

    @pl.when(ki == 0)
    def _init():
        m_sc[...] = jnp.full(m_sc.shape, -jnp.inf, dtype=m_sc.dtype)
        l_sc[...] = jnp.zeros(l_sc.shape, dtype=l_sc.dtype)
        acc_sc[...] = jnp.zeros(acc_sc.shape, dtype=acc_sc.dtype)

    tq, D = q_ref.shape
    hd = D // n_heads

    # bf16 operands for the MXU; softmax statistics and accumulation stay f32.
    q = q_ref[...].astype(jnp.bfloat16)                       # [tq, D] (pre-scaled)
    k = k_ref[...].astype(jnp.bfloat16)                       # [tk, D]
    v = v_ref[...].astype(jnp.bfloat16)                       # [tk, D]

    for h in range(n_heads):                                  # static unroll, 2-D per head
        cols = slice(h * hd, (h + 1) * hd)
        # s = q_h @ k_h^T -> [tq, tk]
        s = lax.dot_general(q[:, cols], k[:, cols],
                            (((1,), (1,)), ((), ())),
                            preferred_element_type=jnp.float32)
        m_prev = m_sc[h]                                      # [tq, 1]
        m_new = jnp.maximum(m_prev, jnp.max(s, axis=-1, keepdims=True))
        alpha = jnp.exp(m_prev - m_new)                       # [tq, 1]
        p = jnp.exp(s - m_new)                                # [tq, tk] f32
        l_sc[h] = alpha * l_sc[h] + jnp.sum(p, axis=-1, keepdims=True)
        acc_sc[:, cols] = alpha * acc_sc[:, cols] + jnp.dot(
            p.astype(jnp.bfloat16), v[:, cols],
            preferred_element_type=jnp.float32)
        m_sc[h] = m_new

    @pl.when(ki == pl.num_programs(2) - 1)
    def _finalize():
        inv_l = jnp.concatenate(
            [jnp.broadcast_to(pl.reciprocal(l_sc[h], approx=True), (tq, hd))
             for h in range(n_heads)], axis=-1)               # [tq, D]
        ctx = (acc_sc[...] * inv_l).astype(jnp.bfloat16)
        out = jnp.dot(ctx, wproj_ref[...],
                      preferred_element_type=jnp.float32) + bproj_ref[...]
        o_ref[...] = out.astype(o_ref.dtype)


def _pick_tile(n, preferred):
    """Largest tile <= preferred that evenly divides n (multiple of 8 if possible)."""
    for t in (preferred, 1024, 512, 256, 128, 64, 32, 16, 8):
        if t <= n and n % t == 0:
            return t
    return n


def multi_head_attention(x, wqkv_t, bqkv, wproj_t, bproj, n_heads):
    """x: [B, T, D] or [B, T, N, D] (attention over the second-to-last axis)."""
    orig_shape = x.shape
    if x.ndim == 4:
        B, T, N, D = x.shape
        x = x.reshape(B * T, N, D)          # attention is independent per (B, T)
    B_, S, D = x.shape
    hd = D // n_heads
    scale = hd ** (-0.5)

    # Weights stored as bf16 (MXU-native operands, half the resident footprint).
    w_qkv = wqkv_t.astype(jnp.bfloat16)
    w_proj = wproj_t.astype(jnp.bfloat16)
    b_qkv = bqkv.astype(jnp.float32).reshape(1, 3 * D)
    b_proj = bproj.astype(jnp.float32).reshape(1, D)

    vmem_limit = 48 * 1024 * 1024           # headroom under v7x's 64 MiB VMEM

    # ---- Stage 1: QKV projection over all B*S rows (amortizes grid overhead).
    rows = B_ * S
    tm = _pick_tile(rows, 512)
    x2 = x.reshape(rows, D)
    qkv_kernel = functools.partial(_qkv_proj_kernel, scale=scale)
    q2, k2, v2 = pl.pallas_call(
        qkv_kernel,
        out_shape=tuple(jax.ShapeDtypeStruct((rows, D), x.dtype) for _ in range(3)),
        grid_spec=pltpu.PrefetchScalarGridSpec(
            num_scalar_prefetch=0,
            grid=(rows // tm,),
            in_specs=[
                pl.BlockSpec((tm, D), lambda i: (i, 0)),      # x row tile
                # Constant index maps: weight/bias blocks never change, so they
                # stay resident in VMEM across grid steps (no per-step re-DMA).
                pl.BlockSpec((D, 3 * D), lambda i: (0, 0)),   # W_qkv^T (bf16)
                pl.BlockSpec((1, 3 * D), lambda i: (0, 0)),   # b_qkv
            ],
            out_specs=tuple(pl.BlockSpec((tm, D), lambda i: (i, 0))
                            for _ in range(3)),
        ),
        compiler_params=pltpu.CompilerParams(
            dimension_semantics=("parallel",),
            vmem_limit_bytes=vmem_limit),
    )(x2, w_qkv, b_qkv)

    q = q2.reshape(B_, S, D)
    k = k2.reshape(B_, S, D)
    v = v2.reshape(B_, S, D)

    # ---- Stage 2: flash-style attention (tiled over keys) + fused projection.
    tq = _pick_tile(S, 256)
    tk = _pick_tile(S, 512)
    attn_kernel = functools.partial(_flash_attn_proj_kernel, n_heads=n_heads)

    out = pl.pallas_call(
        attn_kernel,
        out_shape=jax.ShapeDtypeStruct((B_, S, D), x.dtype),
        grid_spec=pltpu.PrefetchScalarGridSpec(
            num_scalar_prefetch=0,
            grid=(B_, S // tq, S // tk),
            in_specs=[
                pl.BlockSpec((None, tq, D), lambda b, qi, ki: (b, qi, 0)),  # q tile
                pl.BlockSpec((None, tk, D), lambda b, qi, ki: (b, ki, 0)),  # k tile
                pl.BlockSpec((None, tk, D), lambda b, qi, ki: (b, ki, 0)),  # v tile
                pl.BlockSpec((D, D), lambda b, qi, ki: (0, 0)),             # W_proj^T (resident)
                pl.BlockSpec((1, D), lambda b, qi, ki: (0, 0)),             # b_proj  (resident)
            ],
            out_specs=pl.BlockSpec((None, tq, D), lambda b, qi, ki: (b, qi, 0)),
            scratch_shapes=[
                pltpu.VMEM((n_heads, tq, 1), jnp.float32),    # running max m
                pltpu.VMEM((n_heads, tq, 1), jnp.float32),    # running sum l
                pltpu.VMEM((tq, D), jnp.float32),             # un-normalized ctx
            ],
        ),
        compiler_params=pltpu.CompilerParams(
            dimension_semantics=("parallel", "parallel", "arbitrary"),
            vmem_limit_bytes=vmem_limit),
    )(q, k, v, w_proj, b_proj)

    return out.reshape(orig_shape)


def mha_reference(x, wqkv_t, bqkv, wproj_t, bproj, n_heads):
    """Pure-JAX (f32) reference of the intended PyTorch forward (3-D case)."""
    B, T, D = x.shape
    hd = D // n_heads
    scale = hd ** (-0.5)
    qkv = x @ wqkv_t + bqkv                                       # [B, T, 3D]
    qkv = qkv.reshape(B, T, 3, n_heads, hd).transpose(2, 0, 3, 1, 4)
    q, k, v = qkv[0], qkv[1], qkv[2]                              # [B, H, T, hd]
    attn = jnp.einsum('bhqd,bhkd->bhqk', q, k) * scale
    scores = jax.nn.softmax(attn, axis=-1)
    ctx = jnp.einsum('bhqk,bhkd->bhqd', scores, v)
    ctx = ctx.transpose(0, 2, 1, 3).reshape(B, T, D)
    return ctx @ wproj_t + bproj


if __name__ == "__main__":
    # Small shapes consistent with the module: embed_dim divisible by n_heads.
    B, T, D = 2, 8, 32
    n_heads = 4

    key = jax.random.PRNGKey(0)
    kx, kw1, kb1, kw2, kb2, kx4 = jax.random.split(key, 6)

    x = jax.random.normal(kx, (B, T, D), dtype=jnp.float32)

    # Deterministic parameter init (Linear: qkv [3D, D] + [3D], proj [D, D] + [D]),
    # stored transposed as [in, out] so the kernel computes x @ W + b.
    bound = 1.0 / math.sqrt(D)
    wqkv_t = jax.random.uniform(kw1, (D, 3 * D), jnp.float32, -bound, bound)
    bqkv = jax.random.uniform(kb1, (1, 3 * D), jnp.float32, -bound, bound)
    wproj_t = jax.random.uniform(kw2, (D, D), jnp.float32, -bound, bound)
    bproj = jax.random.uniform(kb2, (1, D), jnp.float32, -bound, bound)

    # 3-D input case [B, T, D].
    out = jax.block_until_ready(
        multi_head_attention(x, wqkv_t, bqkv, wproj_t, bproj, n_heads))
    ref = mha_reference(x, wqkv_t, bqkv, wproj_t, bproj, n_heads)
    assert out.shape == (B, T, D)
    assert jnp.allclose(out, ref, atol=3e-2, rtol=3e-2), (
        "mismatch vs reference (3D), max abs diff = %g"
        % float(jnp.max(jnp.abs(out - ref))))

    # 4-D input case [B, T, N, D]: attention over N independently per (B, T).
    x4 = jax.random.normal(kx4, (2, 2, 8, D), dtype=jnp.float32)
    out4 = jax.block_until_ready(
        multi_head_attention(x4, wqkv_t, bqkv, wproj_t, bproj, n_heads))
    ref4 = mha_reference(x4.reshape(4, 8, D), wqkv_t, bqkv, wproj_t, bproj,
                         n_heads).reshape(2, 2, 8, D)
    assert out4.shape == x4.shape
    assert jnp.allclose(out4, ref4, atol=3e-2, rtol=3e-2), (
        "mismatch vs reference (4D), max abs diff = %g"
        % float(jnp.max(jnp.abs(out4 - ref4))))

    print("KERNEL_OK")
</pallas_src>

<mosaic_0001>
module attributes {stable_mosaic.version = 11 : i64} {
  func.func @_qkv_proj_kernel(%arg0: i32, %arg1: memref<16x32xf32, #tpu.memory_space<vmem>>, %arg2: memref<32x96xbf16, #tpu.memory_space<vmem>>, %arg3: memref<1x96xf32, #tpu.memory_space<vmem>>, %arg4: memref<16x32xf32, #tpu.memory_space<vmem>>, %arg5: memref<16x32xf32, #tpu.memory_space<vmem>>, %arg6: memref<16x32xf32, #tpu.memory_space<vmem>>) attributes {dimension_semantics = [#tpu.dimension_semantics<parallel>], iteration_bounds = array<i64: 1>, scalar_prefetch = 0 : i64, scratch_operands = 0 : i64, tpu.core_type = #tpu.core_type<tc>, window_params = [{transform_indices = @transform_0, window_bounds = array<i64: 16, 32>}, {pipeline_mode = #tpu.pipeline_mode<synchronous>, transform_indices = @transform_1, window_bounds = array<i64: 32, 96>}, {pipeline_mode = #tpu.pipeline_mode<synchronous>, transform_indices = @transform_2, window_bounds = array<i64: 1, 96>}, {transform_indices = @transform_3, window_bounds = array<i64: 16, 32>}, {transform_indices = @transform_4, window_bounds = array<i64: 16, 32>}, {transform_indices = @transform_5, window_bounds = array<i64: 16, 32>}]} {
    %c0 = arith.constant 0 : index
    %c0_0 = arith.constant 0 : index
    %0 = vector.load %arg1[%c0, %c0_0] : memref<16x32xf32, #tpu.memory_space<vmem>>, vector<16x32xf32>
    %1 = arith.truncf %0 : vector<16x32xf32> to vector<16x32xbf16>
    %c0_1 = arith.constant 0 : index
    %c0_2 = arith.constant 0 : index
    %2 = vector.load %arg2[%c0_1, %c0_2] : memref<32x96xbf16, #tpu.memory_space<vmem>>, vector<32x96xbf16>
    %cst = arith.constant dense<0.000000e+00> : vector<16x96xf32>
    %3 = tpu.matmul %1, %2, %cst {dimension_numbers = #tpu.dot_dimension_numbers<[1], [0], [0], [1], [0, 0, 1, 1], [], []>} : vector<16x32xbf16>, vector<32x96xbf16>, vector<16x96xf32> -> vector<16x96xf32>
    %c0_3 = arith.constant 0 : index
    %c0_4 = arith.constant 0 : index
    %4 = vector.load %arg3[%c0_3, %c0_4] : memref<1x96xf32, #tpu.memory_space<vmem>>, vector<1x96xf32>
    %5 = vector.broadcast %4 : vector<1x96xf32> to vector<16x96xf32>
    %6 = arith.addf %3, %5 : vector<16x96xf32>
    %7 = vector.extract_strided_slice %6 {offsets = [0, 0], sizes = [16, 32], strides = [1, 1]} : vector<16x96xf32> to vector<16x32xf32>
    %cst_5 = arith.constant 0.353553385 : f32
    %8 = vector.broadcast %cst_5 : f32 to vector<16x32xf32>
    %9 = arith.mulf %7, %8 : vector<16x32xf32>
    %c0_6 = arith.constant 0 : index
    %c0_7 = arith.constant 0 : index
    %10 = vector.load %arg4[%c0_6, %c0_7] : memref<16x32xf32, #tpu.memory_space<vmem>>, vector<16x32xf32>
    tpu.vector_store %arg4[%c0_6, %c0_7], %9 {strides = array<i32>} : memref<16x32xf32, #tpu.memory_space<vmem>>, vector<16x32xf32>,
    %11 = vector.extract_strided_slice %6 {offsets = [0, 32], sizes = [16, 32], strides = [1, 1]} : vector<16x96xf32> to vector<16x32xf32>
    %c0_8 = arith.constant 0 : index
    %c0_9 = arith.constant 0 : index
    %12 = vector.load %arg5[%c0_8, %c0_9] : memref<16x32xf32, #tpu.memory_space<vmem>>, vector<16x32xf32>
    tpu.vector_store %arg5[%c0_8, %c0_9], %11 {strides = array<i32>} : memref<16x32xf32, #tpu.memory_space<vmem>>, vector<16x32xf32>,
    %13 = vector.extract_strided_slice %6 {offsets = [0, 64], sizes = [16, 32], strides = [1, 1]} : vector<16x96xf32> to vector<16x32xf32>
    %c0_10 = arith.constant 0 : index
    %c0_11 = arith.constant 0 : index
    %14 = vector.load %arg6[%c0_10, %c0_11] : memref<16x32xf32, #tpu.memory_space<vmem>>, vector<16x32xf32>
    tpu.vector_store %arg6[%c0_10, %c0_11], %13 {strides = array<i32>} : memref<16x32xf32, #tpu.memory_space<vmem>>, vector<16x32xf32>,
    return
  }
  func.func @transform_0(%arg0: i32) -> (i32, i32) {
    %c0_i32 = arith.constant 0 : i32
    %c0_i32_0 = arith.constant 0 : i32
    return %arg0, %c0_i32 : i32, i32
  }
  func.func @transform_1(%arg0: i32) -> (i32, i32) {
    %c0_i32 = arith.constant 0 : i32
    %c0_i32_0 = arith.constant 0 : i32
    %c0_i32_1 = arith.constant 0 : i32
    return %c0_i32, %c0_i32_0 : i32, i32
  }
  func.func @transform_2(%arg0: i32) -> (i32, i32) {
    %c0_i32 = arith.constant 0 : i32
    %c0_i32_0 = arith.constant 0 : i32
    %c0_i32_1 = arith.constant 0 : i32
    return %c0_i32, %c0_i32_0 : i32, i32
  }
  func.func @transform_3(%arg0: i32) -> (i32, i32) {
    %c0_i32 = arith.constant 0 : i32
    %c0_i32_0 = arith.constant 0 : i32
    return %arg0, %c0_i32 : i32, i32
  }
  func.func @transform_4(%arg0: i32) -> (i32, i32) {
    %c0_i32 = arith.constant 0 : i32
    %c0_i32_0 = arith.constant 0 : i32
    return %arg0, %c0_i32 : i32, i32
  }
  func.func @transform_5(%arg0: i32) -> (i32, i32) {
    %c0_i32 = arith.constant 0 : i32
    %c0_i32_0 = arith.constant 0 : i32
    return %arg0, %c0_i32 : i32, i32
  }
}

</mosaic_0001>

<llo_original>
// kernel: tpu_custom_call.1
$region0: #{tpu_custom_call.1}
  #allocation0 [shape = 'u32[]', space=smem, size = 0x4, offset = 0x4, fixed_abs, tag = 'smem constant byte address 0x4 - core index']
  #allocation1 [shape = 'u32[144,128]{1,0:T(1,128)}', space=vmem, size = 0x12000, scoped, tag = 'internal scratch']
  %s0 = inlined_call_operand.hbm [shape: f32[16,32], index: 0, kind: input, shape index: {}]
  %s1 = inlined_call_operand.hbm [shape: bf16[32,96], index: 1, kind: input, shape index: {}]
  %s2 = inlined_call_operand.vmem [shape: f32[1,96], index: 2, kind: input, shape index: {}]
  %s3 = inlined_call_operand.hbm [shape: f32[16,32], index: 3, kind: output, shape index: {0}]
  %s4 = inlined_call_operand.hbm [shape: f32[16,32], index: 4, kind: output, shape index: {1}]
  %s5 = inlined_call_operand.hbm [shape: f32[16,32], index: 5, kind: output, shape index: {2}]
  %6 = xla_tuple %s3, %s4, %s5
  %s7 = sld [smem:[#allocation0]]
  $region46: #{tpu_custom_call.1} parent=0
    _
  %s9 = ssub.s32 1, %s7
  %s10 = scalar_select 0, %s9, %s7
  $region1: #{tpu_custom_call.1} parent=0
    #allocation2 [shape = 'u8[8192]{0}', space=vmem, size = 0x2000, scoped, tag = 'input window, operand 0, single buffered']
    #allocation3 [shape = 's32[1]{0}', space=sflag, size = 0x4, scoped, tag = 'scoped memory for tpu_custom_call.1']
    #allocation4 [shape = 's32[1]{0}', space=sflag, size = 0x4, scoped, tag = 'scoped memory for tpu_custom_call.1']
    #allocation5 [shape = 'u8[8192]{0}', space=vmem, size = 0x2000, scoped, tag = 'input window, operand 1, single buffered']
    #allocation6 [shape = 's32[1]{0}', space=sflag, size = 0x4, scoped, tag = 'scoped memory for tpu_custom_call.1']
    #allocation7 [shape = 'u8[8192]{0}', space=vmem, size = 0x2000, scoped, tag = 'output window, operand 0, single buffered']
    #allocation8 [shape = 'u8[8192]{0}', space=vmem, size = 0x2000, scoped, tag = 'output window, operand 1, single buffered']
    #allocation9 [shape = 's32[1]{0}', space=sflag, size = 0x4, scoped, tag = 'scoped memory for tpu_custom_call.1']
    #allocation10 [shape = 'u8[8192]{0}', space=vmem, size = 0x2000, scoped, tag = 'output window, operand 2, single buffered']
    %11 = vsyncpa [#allocation3], 0
    %12 = vsyncpa [#allocation6], 0
    %13 = vsyncpa [#allocation4], 0
    %14 = vsyncpa [#allocation9], 0
    // Predicated region
    $region2: #{tpu_custom_call.1} parent=1 // pred_check
      _
    $region3: #{tpu_custom_call.1} parent=1 // pred_check_branch
      %16 = sbr.rel (0) target = $region5
    $region4: #{tpu_custom_call.1} parent=1 // pred_region
      %s18 = ssub.s32 256, 256
      %19 = vsyncadd [#allocation3], %s18
      %s20 = sshll.u32 [#allocation2], 4
      %s21 = int_to_ptr.vmem [resolvable:$true] %s20
      %26 = dma.hbm_to_vmem [thread:$0]  %s0, 256, %s21, [#allocation3], 128, 128, 8
    $region5: #{tpu_custom_call.1} parent=1 // pred_fallthru
      _
    // Predicated region
    $region6: #{tpu_custom_call.1} parent=1 // pred_check
      _
    $region7: #{tpu_custom_call.1} parent=1 // pred_check_branch
      %28 = sbr.rel (0) target = $region9
    $region8: #{tpu_custom_call.1} parent=1 // pred_region
      %s30 = ssub.s32 256, 256
      %31 = vsyncadd [#allocation6], %s30
      %s32 = sshll.u32 [#allocation5], 4
      %s33 = int_to_ptr.vmem [resolvable:$true] %s32
      %38 = dma.hbm_to_vmem [thread:$0]  %s1, 256, %s33, [#allocation6], 64, 64, 4
    $region9: #{tpu_custom_call.1} parent=1 // pred_fallthru
      _
    // Predicated region
    $region10: #{tpu_custom_call.1} parent=1 // pred_check
      _
    $region11: #{tpu_custom_call.1} parent=1 // pred_check_branch
      %40 = sbr.rel (0) target = $region13
    $region12: #{tpu_custom_call.1} parent=1 // pred_region
      _
    $region13: #{tpu_custom_call.1} parent=1 // pred_fallthru
      _
    // Predicated region
    $region14: #{tpu_custom_call.1} parent=1 // pred_check
      _
    $region15: #{tpu_custom_call.1} parent=1 // pred_check_branch
      %42 = sbr.rel (0) target = $region17
    $region16: #{tpu_custom_call.1} parent=1 // pred_region
      %43 = dma.done [#allocation3], 256
    $region17: #{tpu_custom_call.1} parent=1 // pred_fallthru
      _
    // Predicated region
    $region18: #{tpu_custom_call.1} parent=1 // pred_check
      _
    $region19: #{tpu_custom_call.1} parent=1 // pred_check_branch
      %45 = sbr.rel (0) target = $region21
    $region20: #{tpu_custom_call.1} parent=1 // pred_region
      %46 = dma.done [#allocation6], 256
    $region21: #{tpu_custom_call.1} parent=1 // pred_fallthru
      _
    %v48 = vld [vmem:[#allocation2] sm:$0xff]
    %v49 = vld [vmem:[#allocation2 + $0x8] sm:$0xff]
    %v50 = vpack.c.bf16 %v49, %v48
    %v51 = vld [vmem:[#allocation5] sm:$0xf]
    %v52 = vld [vmem:[#allocation5 + $0x4] sm:$0xf]
    %v53 = vld [vmem:[#allocation5 + $0x8] sm:$0xf]
    %v54 = vld [vmem:[#allocation5 + $0xc] sm:$0xf]
    %v55 = vld [vmem:[%s2] sm:$0x1]
    %v57 = vlaneseq
    %v58 = vshrl.u32 %v57, 7
    %v59 = vsub.s32 0, %v58
    %v60 = vrot.slane %v55, %v59
    %v66 = vunpack.c.l.b16 %v51
    %v67 = vunpack.c.l.b16 %v52
    %v68 = vunpack.c.l.b16 %v53
    %v69 = vunpack.c.l.b16 %v54
    %v70 = vpack.c.b16 %v67, %v66
    %v71 = vpack.c.b16 %v69, %v68
    %vm74 = vcmask 261120
    %v76 = vsel %vm74, %v50, 0
    %78 = vmatprep.subr.bf16.mxu0 0
    %79 = vmatpush1.bf16.msra.mxu0 0
    %80 = vmatprep.subr.bf16.mxu0 0
    %81 = vmatpush1.bf16.msra.mxu0 0
    %82 = vmatprep.subr.bf16.mxu0 0
    %83 = vmatpush1.bf16.msra.mxu0 0
    %84 = vmatprep.subr.bf16.mxu0 0
    %85 = vmatpush1.bf16.msra.mxu0 0
    %86 = vmatprep.subr.bf16.mxu0 0
    %87 = vmatpush1.bf16.msra.mxu0 0
    %88 = vmatprep.subr.bf16.mxu0 0
    %89 = vmatpush1.bf16.msra.mxu0 0
    %90 = vmatprep.subr.bf16.mxu0 0
    %91 = vmatpush1.bf16.msra.mxu0 %v71
    %92 = vmatprep.subr.bf16.mxu0 0
    %93 = vmatpush1.bf16.msra.mxu0 %v70
    %94 = vmatprep.subr.bf16.mxu0 0
    %95 = vmatpush2.bf16.msra.mxu0 0
    %96 = vmatprep.subr.bf16.mxu0 0
    %97 = vmatpush2.bf16.msra.mxu0 0
    %98 = vmatprep.subr.bf16.mxu0 0
    %99 = vmatpush2.bf16.msra.mxu0 0
    %100 = vmatprep.subr.bf16.mxu0 0
    %101 = vmatpush2.bf16.msra.mxu0 0
    %102 = vmatprep.subr.bf16.mxu0 0
    %103 = vmatpush2.bf16.msra.mxu0 0
    %104 = vmatprep.subr.bf16.mxu0 0
    %105 = vmatpush2.bf16.msra.mxu0 0
    %106 = vmatprep.subr.bf16.mxu0 0
    %107 = vmatpush2.bf16.msra.mxu0 0
    %108 = vmatprep.subr.bf16.mxu0 0
    %109 = vmatpush2.bf16.msra.mxu0 0
    %110 = vmatprep.mubr.bf16.mxu0 0
    %111 = vmatmul.mubr.bf16.gmra.mxu0 %v76
    %v112 = vpop.f32.mrf.mxu0
    %v113 = vadd.f32 %v60, %v112
    %v114 = vpop.f32.mrf.mxu0
    %v115 = vpop.f32.mrf.mxu0
    %v116 = vadd.f32 %v60, %v115
    %v117 = vpop.f32.mrf.mxu0
    %118 = vdwg.mxu0
    %v119 = vmul.f32 %v113, 0.35355338
    %v120 = vmul.f32 %v116, 0.35355338
    %121 = vst.msk [vmem:[#allocation7] sm:$0xff] %vm74, %v119
    %122 = vst.msk [vmem:[#allocation7 + $0x8] sm:$0xff] %vm74, %v120
    %125 = vrot.lane.b32.xlu0 %v113, 96
    %v126 = vpop.permute.xlu0 %125
    %127 = vrot.lane.b32.xlu0 %v116, 96
    %v128 = vpop.permute.xlu0 %127
    %131 = vst.msk [vmem:[#allocation8] sm:$0xff] %vm74, %v126
    %132 = vst.msk [vmem:[#allocation8 + $0x8] sm:$0xff] %vm74, %v128
    %133 = vrot.lane.b32.xlu0 %v113, 64
    %v134 = vpop.permute.xlu0 %133
    %135 = vrot.lane.b32.xlu0 %v116, 64
    %v136 = vpop.permute.xlu0 %135
    %139 = vst.msk [vmem:[#allocation10] sm:$0xff] %vm74, %v134
    %140 = vst.msk [vmem:[#allocation10 + $0x8] sm:$0xff] %vm74, %v136
    // Predicated region
    $region22: #{tpu_custom_call.1} parent=1 // pred_check
      _
    $region23: #{tpu_custom_call.1} parent=1 // pred_check_branch
      %142 = sbr.rel (0) target = $region25
    $region24: #{tpu_custom_call.1} parent=1 // pred_region
      %s144 = ssub.s32 256, 256
      %145 = vsyncadd [#allocation4], %s144
      %s146 = sshll.u32 [#allocation7], 4
      %s147 = int_to_ptr.vmem [resolvable:$true] %s146
      %152 = dma.vmem_to_hbm [thread:$0]  %s147, 256, %s3, [#allocation4], 128, 128, 8
    $region25: #{tpu_custom_call.1} parent=1 // pred_fallthru
      _
    // Predicated region
    $region26: #{tpu_custom_call.1} parent=1 // pred_check
      _
    $region27: #{tpu_custom_call.1} parent=1 // pred_check_branch
      %154 = sbr.rel (0) target = $region29
    $region28: #{tpu_custom_call.1} parent=1 // pred_region
      %s156 = ssub.s32 256, 256
      %157 = vsyncadd [#allocation9], %s156
      %s158 = sshll.u32 [#allocation8], 4
      %s159 = int_to_ptr.vmem [resolvable:$true] %s158
      %164 = dma.vmem_to_hbm [thread:$0]  %s159, 256, %s4, [#allocation9], 128, 128, 8
    $region29: #{tpu_custom_call.1} parent=1 // pred_fallthru
      _
    // Predicated region
    $region30: #{tpu_custom_call.1} parent=1 // pred_check
      _
    $region31: #{tpu_custom_call.1} parent=1 // pred_check_branch
      %166 = sbr.rel (0) target = $region33
    $region32: #{tpu_custom_call.1} parent=1 // pred_region
      %s168 = ssub.s32 256, 256
      %169 = vsyncadd [#allocation9], %s168
      %s170 = sshll.u32 [#allocation10], 4
      %s171 = int_to_ptr.vmem [resolvable:$true] %s170
      %176 = dma.vmem_to_hbm [thread:$0]  %s171, 256, %s5, [#allocation9], 128, 128, 8
    $region33: #{tpu_custom_call.1} parent=1 // pred_fallthru
      _
    // Predicated region
    $region34: #{tpu_custom_call.1} parent=1 // pred_check
      _
    $region35: #{tpu_custom_call.1} parent=1 // pred_check_branch
      %178 = sbr.rel (0) target = $region37
    $region36: #{tpu_custom_call.1} parent=1 // pred_region
      %179 = dma.done [#allocation4], 256
    $region37: #{tpu_custom_call.1} parent=1 // pred_fallthru
      _
    // Predicated region
    $region38: #{tpu_custom_call.1} parent=1 // pred_check
      _
    $region39: #{tpu_custom_call.1} parent=1 // pred_check_branch
      %181 = sbr.rel (0) target = $region41
    $region40: #{tpu_custom_call.1} parent=1 // pred_region
      %182 = dma.done [#allocation9], 256
    $region41: #{tpu_custom_call.1} parent=1 // pred_fallthru
      _
    // Predicated region
    $region42: #{tpu_custom_call.1} parent=1 // pred_check
      _
    $region43: #{tpu_custom_call.1} parent=1 // pred_check_branch
      %184 = sbr.rel (0) target = $region45
    $region44: #{tpu_custom_call.1} parent=1 // pred_region
      %185 = dma.done [#allocation9], 256
    $region45: #{tpu_custom_call.1} parent=1 // pred_fallthru
      _
    %186 = vsyncpa [#allocation3], 1
    %187 = vsyncpa [#allocation6], 1
    %188 = vsyncpa [#allocation4], 1
    %189 = vsyncpa [#allocation9], 1

</llo_original>
